<compile_context>
chip_gen: v5e
topology: v5e:2x2
jax: 0.10.0
libtpu: 0.0.40
codegen_flags: <defaults>
</compile_context>

<pallas_src>
import math
import functools

import jax
import jax.numpy as jnp
import numpy as np
from jax.experimental import pallas as pl
from jax.experimental.pallas import tpu as pltpu


# ----------------------------------------------------------------------------
# Offset computation (mirrors TALayer.get_base_offset + deform-conv sampling)
# ----------------------------------------------------------------------------
def branch_shifts(kernel_size_2d, unit_size):
    kh, kw = kernel_size_2d
    assert unit_size >= kw
    K = kh * kw
    # Offsets are integral by construction => deform-conv == exact gather.
    assert K % 2 == 1, "equivalent 1-D kernel must be odd so out length == T"
    pad = (K - 1) // 2
    center = (kh - 1) // 2
    return [k - pad + (unit_size - kw) * (k // kw - center) for k in range(K)]


# ----------------------------------------------------------------------------
# Trace-time fusion: dedupe shifts across branches, pre-sum shared weights.
# ----------------------------------------------------------------------------
def _fuse_branches(branch_weights, branch_biases, branch_shift_lists):
    """Returns (sorted distinct shifts, W_fused (OC, S*C), bias (OC, 1))."""
    C = branch_weights[0].shape[1]
    OC = branch_weights[0].shape[2]
    per_shift = {}
    for W, shifts in zip(branch_weights, branch_shift_lists):
        for k, d in enumerate(shifts):
            w_k = W[k].astype(jnp.float32)                     # (C, OC)
            per_shift[d] = per_shift[d] + w_k if d in per_shift else w_k
    shifts = sorted(per_shift.keys())
    # X_stack rows are (shift-major, channel-minor); match that ordering here.
    w_stack = jnp.stack([per_shift[d] for d in shifts], axis=0)  # (S, C, OC)
    w_fused = jnp.transpose(w_stack, (2, 0, 1)).reshape(OC, len(shifts) * C)
    bias = sum(b.astype(jnp.float32) for b in branch_biases).reshape(OC, 1)
    return shifts, w_fused, bias


# ----------------------------------------------------------------------------
# Pallas kernel: one grid step = one batch element ('add' fusion, fused taps).
# ----------------------------------------------------------------------------
def _msta_kernel(shifts, pad, T, t_chunk, x_ref, w_ref, b_ref, o_ref):
    # x_ref: (C, T + 2*pad)   zero-padded input, compute dtype
    # w_ref: (OC, S*C)        shift-fused weights, compute dtype
    # b_ref: (OC, 1)          summed biases, f32
    # o_ref: (OC, T)          f32 output
    w = w_ref[...]
    bias = b_ref[...].astype(jnp.float32)

    # Static Python loop over time chunks bounds the (S*C, t_chunk)
    # intermediate in VMEM; every slice start is a compile-time constant.
    for t0 in range(0, T, t_chunk):
        tw = min(t_chunk, T - t0)
        # One zero-padded shifted view of x per distinct shift, stacked on the
        # sublane axis.  Concatenate in f32 (tile-aligned for any C), then
        # cast to the MXU compute dtype.
        parts = [
            x_ref[:, pad + d + t0: pad + d + t0 + tw].astype(jnp.float32)
            for d in shifts
        ]
        xs = jnp.concatenate(parts, axis=0).astype(w.dtype)     # (S*C, tw)
        acc = jnp.dot(w, xs, preferred_element_type=jnp.float32)  # (OC, tw)
        o_ref[:, t0:t0 + tw] = (acc + bias).astype(o_ref.dtype)


def msta_layer_pallas(x_bct, branch_weights, branch_biases, branch_shift_lists,
                      *, compute_dtype=jnp.bfloat16, t_chunk=512):
    """x_bct: (B, C, T) float32.  Returns (B, OC, T) float32 ('add' fusion)."""
    # TODO(synk): only fusion_type='add' (module default) is implemented;
    # 'concat'/'max' would need per-branch outputs.
    B, C, T = x_bct.shape
    OC = branch_weights[0].shape[-1]

    shifts, w_fused, bias = _fuse_branches(
        branch_weights, branch_biases, branch_shift_lists)
    S = len(shifts)
    P = max(abs(d) for d in shifts)          # halo size; |d| >= T just reads 0s
    T_pad = T + 2 * P
    t_chunk = max(1, min(t_chunk, T))

    # Single zero-pad along T; every shifted window becomes a static slice.
    x_pad = jnp.pad(x_bct, ((0, 0), (0, 0), (P, P))).astype(compute_dtype)
    w_fused = w_fused.astype(compute_dtype)

    kernel = functools.partial(_msta_kernel, tuple(shifts), P, T, t_chunk)

    out = pl.pallas_call(
        kernel,
        out_shape=jax.ShapeDtypeStruct((B, OC, T), jnp.float32),
        grid=(B,),
        in_specs=[
            pl.BlockSpec((None, C, T_pad), lambda b: (b, 0, 0)),   # x (per batch)
            pl.BlockSpec((OC, S * C), lambda b: (0, 0)),           # fused weights
            pl.BlockSpec((OC, 1), lambda b: (0, 0)),               # fused bias
        ],
        out_specs=pl.BlockSpec((None, OC, T), lambda b: (b, 0, 0)),
        # Batch axis is parallel (megacore-shardable).  If very large T/C make
        # per-step VMEM exceed the scoped default, raise vmem_limit_bytes here.
        compiler_params=pltpu.CompilerParams(
            dimension_semantics=("parallel",)),
    )(x_pad, w_fused, bias)

    return out                                                     # (B, OC, T)


# ----------------------------------------------------------------------------
# Pure-JAX reference (no Pallas) for correctness checking
# ----------------------------------------------------------------------------
def msta_layer_ref(x_bct, branch_weights, branch_biases, branch_shift_lists):
    B, C, T = x_bct.shape
    OC = branch_weights[0].shape[-1]
    out = jnp.zeros((B, OC, T), jnp.float32)
    for W, bias, shifts in zip(branch_weights, branch_biases,
                               branch_shift_lists):
        b_out = jnp.zeros((B, OC, T), jnp.float32)
        for k, d in enumerate(shifts):
            if d >= T or d <= -T:
                continue
            if d >= 0:
                xs = jnp.pad(x_bct[:, :, d:], ((0, 0), (0, 0), (0, d)))
            else:
                xs = jnp.pad(x_bct[:, :, :T + d], ((0, 0), (0, 0), (-d, 0)))
            b_out = b_out + jnp.einsum('bct,co->bot', xs, W[k])
        out = out + b_out + bias[None, :, None]
    return out


# ----------------------------------------------------------------------------
# Parameter init (deterministic, mimics TALayer.reset_parameters scale)
# ----------------------------------------------------------------------------
def init_branch_params(key, in_channels, out_channels, kernel_size_2d):
    kh, kw = kernel_size_2d
    K = kh * kw
    stdv = 1.0 / math.sqrt(in_channels * 1 * K)   # n = C * 1 * K
    kw_key, kb_key = jax.random.split(key)
    # stored as (K, C, OC)  ==  torch weight (OC, C, 1, K) transposed
    W = jax.random.uniform(kw_key, (K, in_channels, out_channels),
                           minval=-stdv, maxval=stdv, dtype=jnp.float32)
    bound = 1.0 / math.sqrt(in_channels * K)       # fan_in of torch weight
    bias = jax.random.uniform(kb_key, (out_channels,),
                              minval=-bound, maxval=bound, dtype=jnp.float32)
    return W, bias


if __name__ == "__main__":
    # Small shapes consistent with the module: x is (B, C, T)
    B, C, T = 2, 8, 16
    OC = 8
    kernel_sizes = [(3, 3), (1, 3)]   # equiv kernels 9 and 3
    unit_sizes = [8, 4]
    # fusion_type = 'add'  (default in MSTALayer)

    key = jax.random.PRNGKey(0)
    keys = jax.random.split(key, len(kernel_sizes) + 1)
    x = jax.random.normal(keys[0], (B, C, T), dtype=jnp.float32)

    branch_weights, branch_biases, branch_shift_lists = [], [], []
    for i, (ks, us) in enumerate(zip(kernel_sizes, unit_sizes)):
        W, b = init_branch_params(keys[i + 1], C, OC, ks)
        branch_weights.append(W)
        branch_biases.append(b)
        branch_shift_lists.append(branch_shifts(ks, us))

    ref = msta_layer_ref(x, branch_weights, branch_biases, branch_shift_lists)

    # 1) Exact-semantics check with f32 compute.
    out_f32 = jax.block_until_ready(
        msta_layer_pallas(x, branch_weights, branch_biases,
                          branch_shift_lists, compute_dtype=jnp.float32))
    assert out_f32.shape == (B, OC, T)
    np.testing.assert_allclose(np.asarray(out_f32), np.asarray(ref),
                               rtol=2e-5, atol=2e-5)

    # 2) bf16-fed MXU path (f32 accumulation) -> looser tolerance.
    out_bf16 = jax.block_until_ready(
        msta_layer_pallas(x, branch_weights, branch_biases,
                          branch_shift_lists, compute_dtype=jnp.bfloat16))
    np.testing.assert_allclose(np.asarray(out_bf16), np.asarray(ref),
                               rtol=3e-2, atol=3e-2)

    print("KERNEL_OK")
</pallas_src>

<mosaic_0001>
module attributes {stable_mosaic.version = 11 : i64} {
  func.func @_msta_kernel(%arg0: i32, %arg1: memref<1x8x34xf32, #tpu.memory_space<vmem>>, %arg2: memref<8x72xf32, #tpu.memory_space<vmem>>, %arg3: memref<8x1xf32, #tpu.memory_space<vmem>>, %arg4: memref<1x8x16xf32, #tpu.memory_space<vmem>>) attributes {dimension_semantics = [#tpu.dimension_semantics<parallel>], iteration_bounds = array<i64: 2>, scalar_prefetch = 0 : i64, scratch_operands = 0 : i64, tpu.core_type = #tpu.core_type<tc>, window_params = [{transform_indices = @transform_0, window_bounds = array<i64: 1, 8, 34>}, {pipeline_mode = #tpu.pipeline_mode<synchronous>, transform_indices = @transform_1, window_bounds = array<i64: 8, 72>}, {pipeline_mode = #tpu.pipeline_mode<synchronous>, transform_indices = @transform_2, window_bounds = array<i64: 8, 1>}, {transform_indices = @transform_3, window_bounds = array<i64: 1, 8, 16>}]} {
    %c0 = arith.constant 0 : index
    %c0_0 = arith.constant 0 : index
    %0 = vector.load %arg2[%c0, %c0_0] : memref<8x72xf32, #tpu.memory_space<vmem>>, vector<8x72xf32>
    %c0_1 = arith.constant 0 : index
    %c0_2 = arith.constant 0 : index
    %1 = vector.load %arg3[%c0_1, %c0_2] : memref<8x1xf32, #tpu.memory_space<vmem>>, vector<8x1xf32>
    %c0_3 = arith.constant 0 : index
    %c0_4 = arith.constant 0 : index
    %c0_5 = arith.constant 0 : index
    %2 = vector.load %arg1[%c0_3, %c0_4, %c0_5] : memref<1x8x34xf32, #tpu.memory_space<vmem>>, vector<1x8x16xf32>
    %3 = vector.shape_cast %2 : vector<1x8x16xf32> to vector<8x16xf32>
    %c0_6 = arith.constant 0 : index
    %c0_7 = arith.constant 0 : index
    %c1 = arith.constant 1 : index
    %4 = vector.load %arg1[%c0_6, %c0_7, %c1] : memref<1x8x34xf32, #tpu.memory_space<vmem>>, vector<1x8x16xf32>
    %5 = vector.shape_cast %4 : vector<1x8x16xf32> to vector<8x16xf32>
    %c0_8 = arith.constant 0 : index
    %c0_9 = arith.constant 0 : index
    %c2 = arith.constant 2 : index
    %6 = vector.load %arg1[%c0_8, %c0_9, %c2] : memref<1x8x34xf32, #tpu.memory_space<vmem>>, vector<1x8x16xf32>
    %7 = vector.shape_cast %6 : vector<1x8x16xf32> to vector<8x16xf32>
    %c0_10 = arith.constant 0 : index
    %c0_11 = arith.constant 0 : index
    %c8 = arith.constant 8 : index
    %8 = vector.load %arg1[%c0_10, %c0_11, %c8] : memref<1x8x34xf32, #tpu.memory_space<vmem>>, vector<1x8x16xf32>
    %9 = vector.shape_cast %8 : vector<1x8x16xf32> to vector<8x16xf32>
    %c0_12 = arith.constant 0 : index
    %c0_13 = arith.constant 0 : index
    %c9 = arith.constant 9 : index
    %10 = vector.load %arg1[%c0_12, %c0_13, %c9] : memref<1x8x34xf32, #tpu.memory_space<vmem>>, vector<1x8x16xf32>
    %11 = vector.shape_cast %10 : vector<1x8x16xf32> to vector<8x16xf32>
    %c0_14 = arith.constant 0 : index
    %c0_15 = arith.constant 0 : index
    %c10 = arith.constant 10 : index
    %12 = vector.load %arg1[%c0_14, %c0_15, %c10] : memref<1x8x34xf32, #tpu.memory_space<vmem>>, vector<1x8x16xf32>
    %13 = vector.shape_cast %12 : vector<1x8x16xf32> to vector<8x16xf32>
    %c0_16 = arith.constant 0 : index
    %c0_17 = arith.constant 0 : index
    %c16 = arith.constant 16 : index
    %14 = vector.load %arg1[%c0_16, %c0_17, %c16] : memref<1x8x34xf32, #tpu.memory_space<vmem>>, vector<1x8x16xf32>
    %15 = vector.shape_cast %14 : vector<1x8x16xf32> to vector<8x16xf32>
    %c0_18 = arith.constant 0 : index
    %c0_19 = arith.constant 0 : index
    %c17 = arith.constant 17 : index
    %16 = vector.load %arg1[%c0_18, %c0_19, %c17] : memref<1x8x34xf32, #tpu.memory_space<vmem>>, vector<1x8x16xf32>
    %17 = vector.shape_cast %16 : vector<1x8x16xf32> to vector<8x16xf32>
    %c0_20 = arith.constant 0 : index
    %c0_21 = arith.constant 0 : index
    %c18 = arith.constant 18 : index
    %18 = vector.load %arg1[%c0_20, %c0_21, %c18] : memref<1x8x34xf32, #tpu.memory_space<vmem>>, vector<1x8x16xf32>
    %19 = vector.shape_cast %18 : vector<1x8x16xf32> to vector<8x16xf32>
    %20 = tpu.concatenate %3, %5, %7, %9, %11, %13, %15, %17, %19 in 0 : vector<8x16xf32>, vector<8x16xf32>, vector<8x16xf32>, vector<8x16xf32>, vector<8x16xf32>, vector<8x16xf32>, vector<8x16xf32>, vector<8x16xf32>, vector<8x16xf32> -> vector<72x16xf32>
    %cst = arith.constant dense<0.000000e+00> : vector<8x16xf32>
    %21 = tpu.matmul %0, %20, %cst {dimension_numbers = #tpu.dot_dimension_numbers<[1], [0], [0], [1], [0, 0, 1, 1], [], []>} : vector<8x72xf32>, vector<72x16xf32>, vector<8x16xf32> -> vector<8x16xf32>
    %22 = vector.broadcast %1 : vector<8x1xf32> to vector<8x16xf32>
    %23 = arith.addf %21, %22 : vector<8x16xf32>
    %c0_22 = arith.constant 0 : index
    %c0_23 = arith.constant 0 : index
    %c0_24 = arith.constant 0 : index
    %24 = vector.load %arg4[%c0_22, %c0_23, %c0_24] : memref<1x8x16xf32, #tpu.memory_space<vmem>>, vector<1x8x16xf32>
    %25 = vector.shape_cast %24 : vector<1x8x16xf32> to vector<8x16xf32>
    %26 = vector.shape_cast %23 : vector<8x16xf32> to vector<1x8x16xf32>
    tpu.vector_store %arg4[%c0_22, %c0_23, %c0_24], %26 {strides = array<i32>} : memref<1x8x16xf32, #tpu.memory_space<vmem>>, vector<1x8x16xf32>,
    return
  }
  func.func @transform_0(%arg0: i32) -> (i32, i32, i32) {
    %c0_i32 = arith.constant 0 : i32
    %c0_i32_0 = arith.constant 0 : i32
    %c0_i32_1 = arith.constant 0 : i32
    return %arg0, %c0_i32, %c0_i32_0 : i32, i32, i32
  }
  func.func @transform_1(%arg0: i32) -> (i32, i32) {
    %c0_i32 = arith.constant 0 : i32
    %c0_i32_0 = arith.constant 0 : i32
    %c0_i32_1 = arith.constant 0 : i32
    return %c0_i32, %c0_i32_0 : i32, i32
  }
  func.func @transform_2(%arg0: i32) -> (i32, i32) {
    %c0_i32 = arith.constant 0 : i32
    %c0_i32_0 = arith.constant 0 : i32
    %c0_i32_1 = arith.constant 0 : i32
    return %c0_i32, %c0_i32_0 : i32, i32
  }
  func.func @transform_3(%arg0: i32) -> (i32, i32, i32) {
    %c0_i32 = arith.constant 0 : i32
    %c0_i32_0 = arith.constant 0 : i32
    %c0_i32_1 = arith.constant 0 : i32
    return %arg0, %c0_i32, %c0_i32_0 : i32, i32, i32
  }
}

</mosaic_0001>

<llo_original>
// kernel: tpu_custom_call.1
$region0: #{tpu_custom_call.1}
  #allocation0 [shape = 'u32[]', space=smem, size = 0x4, offset = 0x4, fixed_abs, tag = 'smem constant byte address 0x4 - core index']
  #allocation1 [shape = 'u32[72,128]{1,0:T(1,128)}', space=vmem, size = 0x9000, scoped, tag = 'internal scratch']
  %s0 = inlined_call_operand.hbm [shape: f32[2,8,34], index: 0, kind: input, shape index: {}]
  %s1 = inlined_call_operand.vmem [shape: f32[8,72], index: 1, kind: input, shape index: {}]
  %s2 = inlined_call_operand.vmem [shape: f32[8,1], index: 2, kind: input, shape index: {}]
  %s3 = inlined_call_operand.hbm [shape: f32[2,8,16], index: 3, kind: output, shape index: {}]
  %s4 = sld [smem:[#allocation0]]
  $region49: #{tpu_custom_call.1} parent=0
    _
  %s6 = ssub.s32 1, %s4
  %s7 = scalar_select 0, %s6, %s4
  $region1: #{tpu_custom_call.1} parent=0
    #allocation2 [shape = 'u8[8192]{0}', space=vmem, size = 0x2000, scoped, tag = 'input window, operand 0']
    #allocation3 [shape = 's32[2]{0}', space=sflag, size = 0x8, scoped, tag = 'scoped memory for tpu_custom_call.1']
    #allocation4 [shape = 's32[2]{0}', space=sflag, size = 0x8, scoped, tag = 'scoped memory for tpu_custom_call.1']
    #allocation5 [shape = 'u8[8192]{0}', space=vmem, size = 0x2000, scoped, tag = 'output window, operand 0']
    %8 = vsyncpa [#allocation3], 0
    %s9 = scalar_lea.sflag [#allocation3], 1
    %10 = vsyncpa %s9, 0
    %11 = vsyncpa [#allocation4], 0
    %s12 = scalar_lea.sflag [#allocation4], 1
    %13 = vsyncpa %s12, 0
    loop: start=0, step=1, limit=4
    $region2: #{tpu_custom_call.1} parent=1 // loop_pre_header
      _
    $region3: #{tpu_custom_call.1} parent=1 // loop_header
      %s15 = sphi 0, %s19
      %p16 = scmp.ge.s32.totalorder %s15, 4
      %s25 = sphi 0, %s27
      %s28 = sphi 0, %s25
      %s29 = sphi 0, %s28
      %s45 = sphi 0, %s29
      %s49 = sphi 0, %s49
      %s51 = sphi 0, %s49
      %s52 = sphi 0, %s51
      %s66 = sphi 0, %s52
      %s70 = sphi 0, %s70
      %s72 = sphi 0, %s70
      %s73 = sphi 0, %s72
      %s87 = sphi 0, %s73
      %s93 = sphi 0, %s95
      %s96 = sphi 0, %s93
      %s97 = sphi 0, %s96
      %s113 = sphi 0, %s97
    $region4: #{tpu_custom_call.1} parent=1 // loop_header_branch
      %18 = sbr.rel (%p16) target = $region8
    $region5: #{tpu_custom_call.1} parent=1 // loop_body
      %s20 = ssub.s32 %s15, 1
      %s21 = ssub.s32 %s15, 2
      %s22 = sadd.s32 %s15, 1
      %s23 = ssub.s32 %s15, %s22
      %p24 = scmp.eq.s32.totalorder %s23, 0
      %s26 = sadd.s32 %s25, 1
      %s27 = scalar_select %p24, %s25, %s26
      %p30 = pneg %p24
      %p31 = scmp.eq.s32.totalorder %s15, 1
      %p32 = por %p30, %p31
      %p33 = scmp.ne.s32.totalorder %s25, %s28
      %p34 = scmp.eq.s32.totalorder %s15, 0
      %p35 = por %p33, %p34
      %p36 = scmp.ne.s32.totalorder %s25, %s28
      %p37 = scmp.eq.s32.totalorder %s20, 1
      %p38 = por %p36, %p37
      %p39 = scmp.ne.s32.totalorder %s28, %s29
      %p40 = scmp.eq.s32.totalorder %s20, 0
      %p41 = por %p39, %p40
      %p42 = scmp.ne.s32.totalorder %s28, %s29
      %p43 = scmp.eq.s32.totalorder %s21, 1
      %p44 = por %p42, %p43
      %p46 = scmp.ne.s32.totalorder %s29, %s45
      %p47 = scmp.eq.s32.totalorder %s21, 0
      %p48 = por %p46, %p47
      %s50 = sadd.s32 %s49, 1
      %p53 = scmp.eq.s32.totalorder %s15, 1
      %p54 = scmp.ne.s32.totalorder %s49, %s51
      %p55 = scmp.eq.s32.totalorder %s15, 0
      %p56 = por %p54, %p55
      %p57 = scmp.ne.s32.totalorder %s49, %s51
      %p58 = scmp.eq.s32.totalorder %s20, 1
      %p59 = por %p57, %p58
      %p60 = scmp.ne.s32.totalorder %s51, %s52
      %p61 = scmp.eq.s32.totalorder %s20, 0
      %p62 = por %p60, %p61
      %p63 = scmp.ne.s32.totalorder %s51, %s52
      %p64 = scmp.eq.s32.totalorder %s21, 1
      %p65 = por %p63, %p64
      %p67 = scmp.ne.s32.totalorder %s52, %s66
      %p68 = scmp.eq.s32.totalorder %s21, 0
      %p69 = por %p67, %p68
      %s71 = sadd.s32 %s70, 1
      %p74 = scmp.eq.s32.totalorder %s15, 1
      %p75 = scmp.ne.s32.totalorder %s70, %s72
      %p76 = scmp.eq.s32.totalorder %s15, 0
      %p77 = por %p75, %p76
      %p78 = scmp.ne.s32.totalorder %s70, %s72
      %p79 = scmp.eq.s32.totalorder %s20, 1
      %p80 = por %p78, %p79
      %p81 = scmp.ne.s32.totalorder %s72, %s73
      %p82 = scmp.eq.s32.totalorder %s20, 0
      %p83 = por %p81, %p82
      %p84 = scmp.ne.s32.totalorder %s72, %s73
      %p85 = scmp.eq.s32.totalorder %s21, 1
      %p86 = por %p84, %p85
      %p88 = scmp.ne.s32.totalorder %s73, %s87
      %p89 = scmp.eq.s32.totalorder %s21, 0
      %p90 = por %p88, %p89
      %s91 = ssub.s32 %s15, %s22
      %p92 = scmp.eq.s32.totalorder %s91, 0
      %s94 = sadd.s32 %s93, 1
      %s95 = scalar_select %p92, %s93, %s94
      %p98 = pneg %p92
      %p99 = scmp.eq.s32.totalorder %s15, 1
      %p100 = por %p98, %p99
      %p101 = scmp.ne.s32.totalorder %s93, %s96
      %p102 = scmp.eq.s32.totalorder %s15, 0
      %p103 = por %p101, %p102
      %p104 = scmp.ne.s32.totalorder %s93, %s96
      %p105 = scmp.eq.s32.totalorder %s20, 1
      %p106 = por %p104, %p105
      %p107 = scmp.ne.s32.totalorder %s96, %s97
      %p108 = scmp.eq.s32.totalorder %s20, 0
      %p109 = por %p107, %p108
      %p110 = scmp.ne.s32.totalorder %s96, %s97
      %p111 = scmp.eq.s32.totalorder %s21, 1
      %p112 = por %p110, %p111
      %p114 = scmp.ne.s32.totalorder %s97, %s113
      %p115 = scmp.eq.s32.totalorder %s21, 0
      %p116 = por %p114, %p115
      %p117 = scmp.le.s32.totalorder 1, %s15
      %p118 = scmp.lt.s32.totalorder %s15, 3
      %p119 = pnand %p117, %p118
      %p120 = pneg %p119
      // Predicated region
      $region9: #{tpu_custom_call.1} parent=5 // pred_check
        _
      $region10: #{tpu_custom_call.1} parent=5 // pred_check_branch
        %122 = sbr.rel (%p119) target = $region12
      $region11: #{tpu_custom_call.1} parent=5 // pred_region
        %s123 = ssub.s32 %s15, 1
        // Predicated region
        $region13: #{tpu_custom_call.1} parent=11 // pred_check
          %p124 = pneg %p62
        $region14: #{tpu_custom_call.1} parent=11 // pred_check_branch
          %126 = sbr.rel (%p124) target = $region16
        $region15: #{tpu_custom_call.1} parent=11 // pred_region
          _
        $region16: #{tpu_custom_call.1} parent=11 // pred_fallthru
          _
        // Predicated region
        $region17: #{tpu_custom_call.1} parent=11 // pred_check
          %p127 = pneg %p83
        $region18: #{tpu_custom_call.1} parent=11 // pred_check_branch
          %129 = sbr.rel (%p127) target = $region20
        $region19: #{tpu_custom_call.1} parent=11 // pred_region
          _
        $region20: #{tpu_custom_call.1} parent=11 // pred_fallthru
          _
      $region12: #{tpu_custom_call.1} parent=5 // pred_fallthru
        _
      %p130 = scmp.lt.s32.totalorder %s15, 2
      // Predicated region
      $region21: #{tpu_custom_call.1} parent=5 // pred_check
        %p131 = pneg %p130
      $region22: #{tpu_custom_call.1} parent=5 // pred_check_branch
        %133 = sbr.rel (%p131) target = $region24
      $region23: #{tpu_custom_call.1} parent=5 // pred_region
        // Predicated region
        $region25: #{tpu_custom_call.1} parent=23 // pred_check
          %p134 = pneg %p35
        $region26: #{tpu_custom_call.1} parent=23 // pred_check_branch
          %136 = sbr.rel (%p134) target = $region28
        $region27: #{tpu_custom_call.1} parent=23 // pred_region
          %s137 = sand.u32 %s25, 1
          %s138 = scalar_lea.sflag [#allocation3], %s137
          %s139 = sand.u32 %s25, 1
          %s140 = smul.addr %s139, 8
          %s141 = scalar_lea.vmem [#allocation2], %s140
          %143 = vsyncadd %s138, 0
          %s144 = smul.addr %s15, 8
          %s145 = scalar_lea.hbm %s0, %s144
          %s147 = sshll.u32 %s145, 4
          %s148 = int_to_ptr.hbm [resolvable:$true] %s147
          %s149 = sshll.u32 %s141, 4
          %s150 = int_to_ptr.vmem [resolvable:$true] %s149
          %152 = dma.hbm_to_vmem [thread:$0]  %s148, 128, %s150, %s138
        $region28: #{tpu_custom_call.1} parent=23 // pred_fallthru
          _
      $region24: #{tpu_custom_call.1} parent=5 // pred_fallthru
        _
      %p153 = scmp.le.s32.totalorder 1, %s15
      %p154 = scmp.lt.s32.totalorder %s15, 3
      %p155 = pnand %p153, %p154
      %p156 = pneg %p155
      // Predicated region
      $region29: #{tpu_custom_call.1} parent=5 // pred_check
        _
      $region30: #{tpu_custom_call.1} parent=5 // pred_check_branch
        %158 = sbr.rel (%p155) target = $region32
      $region31: #{tpu_custom_call.1} parent=5 // pred_region
        %s159 = ssub.s32 %s15, 1
        %s160 = sand.u32 %s28, 1
        %s161 = scalar_lea.sflag [#allocation3], %s160
        %s162 = sand.u32 %s28, 1
        %s163 = smul.addr %s162, 8
        %s164 = scalar_lea.vmem [#allocation2], %s163
        // Predicated region
        $region33: #{tpu_custom_call.1} parent=31 // pred_check
          %p165 = pneg %p41
        $region34: #{tpu_custom_call.1} parent=31 // pred_check_branch
          %167 = sbr.rel (%p165) target = $region36
        $region35: #{tpu_custom_call.1} parent=31 // pred_region
          %169 = dma.done %s161, 128
        $region36: #{tpu_custom_call.1} parent=31 // pred_fallthru
          _
        %s170 = sand.u32 %s28, 1
        %s171 = scalar_lea.sflag [#allocation3], %s170
        %s172 = sand.u32 %s28, 1
        %s173 = smul.addr %s172, 8
        %s174 = scalar_lea.vmem [#allocation2], %s173
        %p175 = pneg %p41
        %p176 = pneg %p38
        %p177 = pneg %p62
        %p178 = pneg %p59
        %p179 = pneg %p83
        %p180 = pneg %p80
        %p181 = pneg %p109
        %p182 = pneg %p106
        %s183 = sand.u32 %s96, 1
        %s184 = scalar_lea.sflag [#allocation4], %s183
        %s185 = sand.u32 %s96, 1
        %s186 = smul.addr %s185, 8
        %s187 = scalar_lea.vmem [#allocation5], %s186
        %v188 = vld [vmem:[%s1] sm:$0xff]
        %v189 = vld [vmem:[%s2] sm:$0xff]
        %v190 = vld [vmem:[%s164] sm:$0xff]
        %192 = vrot.lane.b32.xlu0 %v190, 127
        %v193 = vpop.permute.xlu0 %192
        %195 = vrot.lane.b32.xlu0 %v190, 126
        %v196 = vpop.permute.xlu0 %195
        %198 = vrot.lane.b32.xlu0 %v190, 120
        %v199 = vpop.permute.xlu0 %198
        %201 = vrot.lane.b32.xlu0 %v190, 119
        %v202 = vpop.permute.xlu0 %201
        %204 = vrot.lane.b32.xlu0 %v190, 118
        %v205 = vpop.permute.xlu0 %204
        %207 = vrot.lane.b32.xlu0 %v190, 112
        %v208 = vpop.permute.xlu0 %207
        %210 = vrot.lane.b32.xlu0 %v190, 111
        %v211 = vpop.permute.xlu0 %210
        %213 = vrot.lane.b32.xlu0 %v190, 110
        %v214 = vpop.permute.xlu0 %213
        %217 = vset.pattern.permute.xlu0 0
        %218 = vperm.xlu0 %217, %v189
        %v219 = vpop.permute.xlu0 %218
        %vm221 = vcmask 588800
        %v223 = vsel %vm221, %v188, 0
        %225 = vmatpush.msra.mxu0 0.0
        %226 = vmatpush.msra.mxu0 0.0
        %227 = vmatpush.msra.mxu0 0.0
        %228 = vmatpush.msra.mxu0 0.0
        %229 = vmatpush.msra.mxu0 0.0
        %230 = vmatpush.msra.mxu0 0.0
        %231 = vmatpush.msra.mxu0 0.0
        %232 = vmatpush.msra.mxu0 %v214
        %233 = vmatpush.msra.mxu0 %v211
        %234 = vmatpush.msra.mxu0 %v208
        %235 = vmatpush.msra.mxu0 %v205
        %236 = vmatpush.msra.mxu0 %v202
        %237 = vmatpush.msra.mxu0 %v199
        %238 = vmatpush.msra.mxu0 %v196
        %239 = vmatpush.msra.mxu0 %v193
        %240 = vmatpush.msra.mxu0 %v190
        %241 = vmatmul.f32.gmra.mxu0 %v223
        %v242 = vpop.f32.mrf.mxu0
        %v243 = vadd.f32 %v219, %v242
        %244 = vdwg.mxu0
        %vm245 = vcmask 130048
        %246 = vst.msk [vmem:[%s187] sm:$0xff] %vm245, %v243
        %s247 = sand.u32 %s96, 1
        %s248 = scalar_lea.sflag [#allocation4], %s247
        %s249 = sand.u32 %s96, 1
        %s250 = smul.addr %s249, 8
        %s251 = scalar_lea.vmem [#allocation5], %s250
        // Predicated region
        $region37: #{tpu_custom_call.1} parent=31 // pred_check
          %p252 = pneg %p106
        $region38: #{tpu_custom_call.1} parent=31 // pred_check_branch
          %254 = sbr.rel (%p252) target = $region40
        $region39: #{tpu_custom_call.1} parent=31 // pred_region
          %256 = vsyncadd %s248, 0
          %s257 = smul.addr %s20, 8
          %s258 = scalar_lea.hbm %s3, %s257
          %s260 = sshll.u32 %s251, 4
          %s261 = int_to_ptr.vmem [resolvable:$true] %s260
          %s262 = sshll.u32 %s258, 4
          %s263 = int_to_ptr.hbm [resolvable:$true] %s262
          %265 = dma.vmem_to_hbm [thread:$0]  %s261, 128, %s263, %s248
        $region40: #{tpu_custom_call.1} parent=31 // pred_fallthru
          _
      $region32: #{tpu_custom_call.1} parent=5 // pred_fallthru
        _
      %p266 = scmp.le.s32.totalorder 2, %s15
      // Predicated region
      $region41: #{tpu_custom_call.1} parent=5 // pred_check
        %p267 = pneg %p266
      $region42: #{tpu_custom_call.1} parent=5 // pred_check_branch
        %269 = sbr.rel (%p267) target = $region44
      $region43: #{tpu_custom_call.1} parent=5 // pred_region
        %s270 = ssub.s32 %s15, 2
        // Predicated region
        $region45: #{tpu_custom_call.1} parent=43 // pred_check
          %p271 = pneg %p112
        $region46: #{tpu_custom_call.1} parent=43 // pred_check_branch
          %273 = sbr.rel (%p271) target = $region48
        $region47: #{tpu_custom_call.1} parent=43 // pred_region
          %s274 = sand.u32 %s97, 1
          %s275 = scalar_lea.sflag [#allocation4], %s274
          %s276 = sand.u32 %s97, 1
          %s277 = smul.addr %s276, 8
          %s278 = scalar_lea.vmem [#allocation5], %s277
          %280 = dma.done %s275, 128
        $region48: #{tpu_custom_call.1} parent=43 // pred_fallthru
          _
      $region44: #{tpu_custom_call.1} parent=5 // pred_fallthru
        _
    $region6: #{tpu_custom_call.1} parent=1 // loop_footer
      %s19 = sadd.s32 1, %s15
    $region7: #{tpu_custom_call.1} parent=1 // loop_footer_branch
      %14 = sbr.rel target = $region3
    $region8: #{tpu_custom_call.1} parent=1 // loop_exit
      _
    %281 = vsyncpa [#allocation3], 1
    %s282 = scalar_lea.sflag [#allocation3], 1
    %283 = vsyncpa %s282, 1
    %284 = vsyncpa [#allocation4], 1
    %s285 = scalar_lea.sflag [#allocation4], 1
    %286 = vsyncpa %s285, 1

</llo_original>
